<compile_context>
chip_gen: v7x
topology: tpu7x:2x2x1
jax: 0.10.0
libtpu: 0.0.40
codegen_flags: <defaults>
</compile_context>

<pallas_src>
import functools

import jax
import jax.numpy as jnp
from jax import lax
from jax.experimental import pallas as pl
from jax.experimental.pallas import tpu as pltpu

EPS = 1e-8  # torch.cosine_similarity default eps


def _round_up(x, m):
    return ((x + m - 1) // m) * m


def _cfg_embedding_kernel(nodes_ref, packed_ref, out_ref, acc_ref, *,
                          n_rows, block_rows):
    # nodes_ref : (TN, D) tile of cfg node embeddings (encoder output)
    # packed_ref: (4, D)  rows = [stateVec, emb_smt, emb_CE, attvec]
    # out_ref   : (1, D)  overall_feature
    # acc_ref   : (1, D)  f32 accumulator for cfg_emb = weighted1 @ nodes
    k = pl.program_id(0)
    last = pl.num_programs(0) - 1

    @pl.when(k == 0)
    def _():
        acc_ref[...] = jnp.zeros_like(acc_ref)

    nodes = nodes_ref[...].astype(jnp.float32)          # (TN, D)
    state = packed_ref[0:1, :].astype(jnp.float32)      # (1, D)

    def accumulate(tile):
        # weighted1_i = <node_i, stateVec>        (VPU mul + lane reduce)
        s = jnp.sum(tile * state, axis=-1, keepdims=True)           # (TN, 1)
        # cfg_emb += sum_i weighted1_i * node_i   (VPU mul + sublane reduce)
        acc_ref[...] += jnp.sum(s * tile, axis=0, keepdims=True)    # (1, D)

    rem = n_rows % block_rows
    if rem == 0:
        # N divides the tile: no masking anywhere.
        accumulate(nodes)
    else:
        # Only the single ragged last tile pays the (TN, D) mask.
        @pl.when(k != last)
        def _():
            accumulate(nodes)

        @pl.when(k == last)
        def _():
            row = lax.broadcasted_iota(jnp.int32, (block_rows, 1), 0)
            accumulate(jnp.where(row < rem, nodes, 0.0))

    @pl.when(k == last)
    def _():
        cfg = acc_ref[...]                               # (1, D) f32
        smt = packed_ref[1:2, :].astype(jnp.float32)     # (1, D)
        ce = packed_ref[2:3, :].astype(jnp.float32)      # (1, D)
        att = packed_ref[3:4, :].astype(jnp.float32)     # (1, D)

        # Fused cosine numerators / norms over a stacked (3, D) block.
        vecs = jnp.concatenate([cfg, smt, ce], axis=0)                 # (3, D)
        num = jnp.sum(vecs * att, axis=-1, keepdims=True)              # (3, 1)
        vec_norm = jnp.sqrt(jnp.sum(vecs * vecs, axis=-1, keepdims=True))
        att_norm = jnp.sqrt(jnp.sum(att * att, axis=-1, keepdims=True))
        # Epilogue runs once per kernel -> exact math (no approx reciprocal).
        denom = jnp.maximum(vec_norm, EPS) * jnp.maximum(att_norm, EPS)
        cos = num / denom                                              # (3, 1)

        # softmax over the 3 similarities, then overall = swis @ [cfg; smt; ce]
        m = jnp.max(cos, axis=0, keepdims=True)                        # (1, 1)
        e = jnp.exp(cos - m)                                           # (3, 1)
        w = e / jnp.sum(e, axis=0, keepdims=True)                      # (3, 1)
        out_ref[...] = jnp.sum(w * vecs, axis=0,
                               keepdims=True).astype(out_ref.dtype)


def cfg_embedding_forward(cfg_nodes, state_vec, emb_smt, emb_ce, attvec, *,
                          block_rows=None, target_tile_bytes=8 << 20):
    """CFG_Embedding forward.

    cfg_nodes: (N, D) encoder output. Prefer bf16 here: the kernel streams it
               from HBM (memory-bound) and upcasts to f32 in-kernel, so bf16
               halves HBM traffic at no accuracy cost in the f32 accumulator.
    state_vec, emb_smt, emb_ce, attvec: (1, D).
    Returns overall_feature: (1, D) f32.
    """
    N, D = cfg_nodes.shape
    if N == 0:
        # Empty graph: mm over zero rows -> zero cfg embedding; feed one zero
        # row so the streaming loop and epilogue still execute.
        cfg_nodes = jnp.zeros((1, D), cfg_nodes.dtype)
        N = 1

    # Pack the four small row vectors into one (4, D) input -> single DMA,
    # resident across the whole grid.
    packed = jnp.concatenate(
        [state_vec, emb_smt, emb_ce, attvec], axis=0).astype(jnp.float32)

    itemsize = jnp.dtype(cfg_nodes.dtype).itemsize
    sub = max(8, 32 // itemsize)            # sublane multiple (f32:8, bf16:16)

    if block_rows is None:
        # Byte-budget-driven tile: ~target_tile_bytes per streamed buffer.
        block_rows = max(sub, (target_tile_bytes // (D * itemsize)) // sub * sub)
    # Cap a single tile at 16 MiB so the double-buffered stream stays well
    # under v7x's 64 MiB physical VMEM.
    max_tn = max(sub, ((16 << 20) // (D * itemsize)) // sub * sub)
    tn = max(sub, min(_round_up(block_rows, sub), _round_up(N, sub), max_tn))
    grid_n = pl.cdiv(N, tn)

    tile_bytes = tn * D * itemsize
    # Double-buffered node stream + small resident blocks + compiler margin.
    vmem_limit = int(min(48 << 20, max(16 << 20, 2 * tile_bytes + (4 << 20))))

    kernel = functools.partial(_cfg_embedding_kernel, n_rows=N, block_rows=tn)
    return pl.pallas_call(
        kernel,
        out_shape=jax.ShapeDtypeStruct((1, D), jnp.float32),
        grid_spec=pltpu.PrefetchScalarGridSpec(
            num_scalar_prefetch=0,
            grid=(grid_n,),
            in_specs=[
                pl.BlockSpec((tn, D), lambda k: (k, 0)),   # streamed node tiles
                pl.BlockSpec((4, D), lambda k: (0, 0)),    # resident small vecs
            ],
            out_specs=pl.BlockSpec((1, D), lambda k: (0, 0)),
            scratch_shapes=[pltpu.VMEM((1, D), jnp.float32)],
        ),
        compiler_params=pltpu.CompilerParams(
            dimension_semantics=("arbitrary",),
            vmem_limit_bytes=vmem_limit),
    )(cfg_nodes, packed)


def cfg_embedding_reference(cfg_nodes, state_vec, emb_smt, emb_ce, attvec):
    """Pure-JAX reference mirroring the PyTorch forward."""
    w1 = (cfg_nodes @ state_vec.T).T                      # (1, N)
    cfg = w1 @ cfg_nodes                                  # (1, D)

    def cos(a, b):
        num = jnp.sum(a * b, axis=-1)
        na = jnp.linalg.norm(a, axis=-1)
        nb = jnp.linalg.norm(b, axis=-1)
        return num / (jnp.maximum(na, EPS) * jnp.maximum(nb, EPS))

    weis = jnp.concatenate(
        [cos(cfg, attvec), cos(emb_smt, attvec), cos(emb_ce, attvec)],
        axis=0).reshape(1, 3)
    swis = jax.nn.softmax(weis, axis=1)
    three = jnp.concatenate([cfg, emb_smt, emb_ce], axis=0)  # (3, D)
    return swis @ three                                      # (1, D)


if __name__ == "__main__":
    # SIZE_EXP_NODE_FEATURE -> D; number of CFG nodes -> N (small test shapes)
    D = 128
    N = 200   # not a multiple of the small test tile -> exercises ragged path

    key = jax.random.PRNGKey(0)
    k_nodes, k_state, k_smt, k_ce, k_att = jax.random.split(key, 5)

    # Stand-in for self.encoder(self.g_list) output (see TODO(synk) above).
    cfg_nodes = jax.random.normal(k_nodes, (N, D), dtype=jnp.float32)
    state_vec = jax.random.normal(k_state, (1, D), dtype=jnp.float32)
    emb_smt = jax.random.normal(k_smt, (1, D), dtype=jnp.float32)
    emb_ce = jax.random.normal(k_ce, (1, D), dtype=jnp.float32)
    # Parameter attvec ~ torch.randn((1, D)), initialized deterministically.
    attvec = jax.random.normal(k_att, (1, D), dtype=jnp.float32)

    ref = cfg_embedding_reference(cfg_nodes, state_vec, emb_smt, emb_ce, attvec)

    def check(out, ref_out, name):
        out = jax.block_until_ready(out)
        assert out.shape == ref_out.shape, name
        err = float(jnp.max(jnp.abs(out - ref_out)))
        tol = 2e-3 * (1.0 + float(jnp.max(jnp.abs(ref_out))))
        assert err <= tol, f"{name}: max abs err {err} > tol {tol}"

    # 1) auto (byte-budget) tile: whole N in one block at these small shapes
    out1 = cfg_embedding_forward(cfg_nodes, state_vec, emb_smt, emb_ce, attvec)
    check(out1, ref, "auto-tile f32")

    # 2) multi-tile pipelined path with a ragged last tile
    out2 = cfg_embedding_forward(cfg_nodes, state_vec, emb_smt, emb_ce, attvec,
                                 block_rows=64)
    check(out2, ref, "tiled f32")

    # 3) bf16 streaming of the (N, D) node block, f32 accumulation in-kernel
    nodes_bf16 = cfg_nodes.astype(jnp.bfloat16)
    ref_bf16 = cfg_embedding_reference(nodes_bf16.astype(jnp.float32),
                                       state_vec, emb_smt, emb_ce, attvec)
    out3 = cfg_embedding_forward(nodes_bf16, state_vec, emb_smt, emb_ce, attvec,
                                 block_rows=64)
    check(out3, ref_bf16, "tiled bf16")

    print("KERNEL_OK")
</pallas_src>

<mosaic_0001>
module attributes {stable_mosaic.version = 11 : i64} {
  func.func @_cfg_embedding_kernel(%arg0: i32, %arg1: memref<200x128xf32, #tpu.memory_space<vmem>>, %arg2: memref<4x128xf32, #tpu.memory_space<vmem>>, %arg3: memref<1x128xf32, #tpu.memory_space<vmem>>, %arg4: memref<1x128xf32, #tpu.memory_space<vmem>>) attributes {dimension_semantics = [#tpu.dimension_semantics<arbitrary>], iteration_bounds = array<i64: 1>, scalar_prefetch = 0 : i64, scratch_operands = 1 : i64, tpu.core_type = #tpu.core_type<tc>, window_params = [{transform_indices = @transform_0, window_bounds = array<i64: 200, 128>}, {pipeline_mode = #tpu.pipeline_mode<synchronous>, transform_indices = @transform_1, window_bounds = array<i64: 4, 128>}, {pipeline_mode = #tpu.pipeline_mode<synchronous>, transform_indices = @transform_2, window_bounds = array<i64: 1, 128>}]} {
    %c0_i32 = arith.constant 0 : i32
    %0 = arith.cmpi eq, %arg0, %c0_i32 : i32
    %1 = arith.extui %0 : i1 to i32
    %c0_i32_0 = arith.constant 0 : i32
    %2 = arith.cmpi ne, %1, %c0_i32_0 : i32
    scf.if %2 {
      %cst_11 = arith.constant 0.000000e+00 : f32
      %19 = vector.broadcast %cst_11 : f32 to vector<1x128xf32>
      %c0_12 = arith.constant 0 : index
      %c0_13 = arith.constant 0 : index
      %20 = vector.load %arg4[%c0_12, %c0_13] : memref<1x128xf32, #tpu.memory_space<vmem>>, vector<1x128xf32>
      tpu.vector_store %arg4[%c0_12, %c0_13], %19 {strides = array<i32>} : memref<1x128xf32, #tpu.memory_space<vmem>>, vector<1x128xf32>,
    } else {
    }
    %c0 = arith.constant 0 : index
    %c0_1 = arith.constant 0 : index
    %3 = vector.load %arg1[%c0, %c0_1] : memref<200x128xf32, #tpu.memory_space<vmem>>, vector<200x128xf32>
    %c0_2 = arith.constant 0 : index
    %c0_3 = arith.constant 0 : index
    %4 = vector.load %arg2[%c0_2, %c0_3] : memref<4x128xf32, #tpu.memory_space<vmem>>, vector<1x128xf32>
    %5 = vector.broadcast %4 : vector<1x128xf32> to vector<200x128xf32>
    %6 = arith.mulf %3, %5 : vector<200x128xf32>
    %cst = arith.constant dense<0.000000e+00> : vector<200xf32>
    %7 = vector.multi_reduction <add>, %6, %cst [1] : vector<200x128xf32> to vector<200xf32>
    %8 = vector.shape_cast %7 : vector<200xf32> to vector<200x1xf32>
    %c0_4 = arith.constant 0 : index
    %c0_5 = arith.constant 0 : index
    %9 = vector.load %arg4[%c0_4, %c0_5] : memref<1x128xf32, #tpu.memory_space<vmem>>, vector<1x128xf32>
    %10 = vector.broadcast %8 : vector<200x1xf32> to vector<200x128xf32>
    %11 = arith.mulf %10, %3 : vector<200x128xf32>
    %cst_6 = arith.constant dense<0.000000e+00> : vector<128xf32>
    %12 = vector.multi_reduction <add>, %11, %cst_6 [0] : vector<200x128xf32> to vector<128xf32>
    %13 = vector.shape_cast %12 : vector<128xf32> to vector<1x128xf32>
    %14 = arith.addf %9, %13 : vector<1x128xf32>
    %c0_7 = arith.constant 0 : index
    %c0_8 = arith.constant 0 : index
    %15 = vector.load %arg4[%c0_7, %c0_8] : memref<1x128xf32, #tpu.memory_space<vmem>>, vector<1x128xf32>
    tpu.vector_store %arg4[%c0_7, %c0_8], %14 {strides = array<i32>} : memref<1x128xf32, #tpu.memory_space<vmem>>, vector<1x128xf32>,
    %c0_i32_9 = arith.constant 0 : i32
    %16 = arith.cmpi eq, %arg0, %c0_i32_9 : i32
    %17 = arith.extui %16 : i1 to i32
    %c0_i32_10 = arith.constant 0 : i32
    %18 = arith.cmpi ne, %17, %c0_i32_10 : i32
    scf.if %18 {
      %c0_11 = arith.constant 0 : index
      %c0_12 = arith.constant 0 : index
      %19 = vector.load %arg4[%c0_11, %c0_12] : memref<1x128xf32, #tpu.memory_space<vmem>>, vector<1x128xf32>
      %c1 = arith.constant 1 : index
      %c0_13 = arith.constant 0 : index
      %20 = vector.load %arg2[%c1, %c0_13] : memref<4x128xf32, #tpu.memory_space<vmem>>, vector<1x128xf32>
      %c2 = arith.constant 2 : index
      %c0_14 = arith.constant 0 : index
      %21 = vector.load %arg2[%c2, %c0_14] : memref<4x128xf32, #tpu.memory_space<vmem>>, vector<1x128xf32>
      %c3 = arith.constant 3 : index
      %c0_15 = arith.constant 0 : index
      %22 = vector.load %arg2[%c3, %c0_15] : memref<4x128xf32, #tpu.memory_space<vmem>>, vector<1x128xf32>
      %23 = tpu.concatenate %19, %20, %21 in 0 : vector<1x128xf32>, vector<1x128xf32>, vector<1x128xf32> -> vector<3x128xf32>
      %24 = vector.broadcast %22 : vector<1x128xf32> to vector<3x128xf32>
      %25 = arith.mulf %23, %24 : vector<3x128xf32>
      %cst_16 = arith.constant dense<0.000000e+00> : vector<3xf32>
      %26 = vector.multi_reduction <add>, %25, %cst_16 [1] : vector<3x128xf32> to vector<3xf32>
      %27 = vector.shape_cast %26 : vector<3xf32> to vector<3x1xf32>
      %28 = arith.mulf %23, %23 : vector<3x128xf32>
      %cst_17 = arith.constant dense<0.000000e+00> : vector<3xf32>
      %29 = vector.multi_reduction <add>, %28, %cst_17 [1] : vector<3x128xf32> to vector<3xf32>
      %30 = vector.shape_cast %29 : vector<3xf32> to vector<3x1xf32>
      %31 = math.sqrt %30 : vector<3x1xf32>
      %32 = arith.mulf %22, %22 : vector<1x128xf32>
      %cst_18 = arith.constant dense<0.000000e+00> : vector<1xf32>
      %33 = vector.multi_reduction <add>, %32, %cst_18 [1] : vector<1x128xf32> to vector<1xf32>
      %34 = vector.shape_cast %33 : vector<1xf32> to vector<1x1xf32>
      %35 = math.sqrt %34 : vector<1x1xf32>
      %cst_19 = arith.constant 9.99999993E-9 : f32
      %36 = vector.broadcast %cst_19 : f32 to vector<3x1xf32>
      %37 = arith.maximumf %31, %36 : vector<3x1xf32>
      %cst_20 = arith.constant 9.99999993E-9 : f32
      %38 = vector.broadcast %cst_20 : f32 to vector<1x1xf32>
      %39 = arith.maximumf %35, %38 : vector<1x1xf32>
      %40 = vector.broadcast %39 : vector<1x1xf32> to vector<3x1xf32>
      %41 = arith.mulf %37, %40 : vector<3x1xf32>
      %42 = arith.divf %27, %41 : vector<3x1xf32>
      %cst_21 = arith.constant dense<0xFF800000> : vector<1xf32>
      %43 = vector.multi_reduction <maximumf>, %42, %cst_21 [0] : vector<3x1xf32> to vector<1xf32>
      %44 = vector.shape_cast %43 : vector<1xf32> to vector<1x1xf32>
      %45 = vector.broadcast %44 : vector<1x1xf32> to vector<3x1xf32>
      %46 = arith.subf %42, %45 : vector<3x1xf32>
      %47 = math.exp %46 : vector<3x1xf32>
      %cst_22 = arith.constant dense<0.000000e+00> : vector<1xf32>
      %48 = vector.multi_reduction <add>, %47, %cst_22 [0] : vector<3x1xf32> to vector<1xf32>
      %49 = vector.shape_cast %48 : vector<1xf32> to vector<1x1xf32>
      %50 = vector.broadcast %49 : vector<1x1xf32> to vector<3x1xf32>
      %51 = arith.divf %47, %50 : vector<3x1xf32>
      %52 = vector.broadcast %51 : vector<3x1xf32> to vector<3x128xf32>
      %53 = arith.mulf %52, %23 : vector<3x128xf32>
      %cst_23 = arith.constant dense<0.000000e+00> : vector<128xf32>
      %54 = vector.multi_reduction <add>, %53, %cst_23 [0] : vector<3x128xf32> to vector<128xf32>
      %55 = vector.shape_cast %54 : vector<128xf32> to vector<1x128xf32>
      %c0_24 = arith.constant 0 : index
      %c0_25 = arith.constant 0 : index
      %56 = vector.load %arg3[%c0_24, %c0_25] : memref<1x128xf32, #tpu.memory_space<vmem>>, vector<1x128xf32>
      tpu.vector_store %arg3[%c0_24, %c0_25], %55 {strides = array<i32>} : memref<1x128xf32, #tpu.memory_space<vmem>>, vector<1x128xf32>,
    } else {
    }
    return
  }
  func.func @transform_0(%arg0: i32) -> (i32, i32) {
    %c0_i32 = arith.constant 0 : i32
    %c0_i32_0 = arith.constant 0 : i32
    return %arg0, %c0_i32 : i32, i32
  }
  func.func @transform_1(%arg0: i32) -> (i32, i32) {
    %c0_i32 = arith.constant 0 : i32
    %c0_i32_0 = arith.constant 0 : i32
    %c0_i32_1 = arith.constant 0 : i32
    return %c0_i32, %c0_i32_0 : i32, i32
  }
  func.func @transform_2(%arg0: i32) -> (i32, i32) {
    %c0_i32 = arith.constant 0 : i32
    %c0_i32_0 = arith.constant 0 : i32
    %c0_i32_1 = arith.constant 0 : i32
    return %c0_i32, %c0_i32_0 : i32, i32
  }
}

</mosaic_0001>

<llo_original>
// kernel: tpu_custom_call.1
$region0: #{tpu_custom_call.1}
  #allocation0 [shape = 'u32[]', space=smem, size = 0x4, offset = 0x4, fixed_abs, tag = 'smem constant byte address 0x4 - core index']
  #allocation1 [shape = 'u32[144,128]{1,0:T(1,128)}', space=vmem, size = 0x12000, scoped, tag = 'internal scratch']
  #allocation2 [shape = 'f32[1,128]{1,0:T(1,128)}', space=vmem, size = 0x200, scoped, tag = 'scratch operand']
  %s0 = inlined_call_operand.hbm [shape: f32[200,128], index: 0, kind: input, shape index: {}]
  %s1 = inlined_call_operand.hbm [shape: f32[4,128], index: 1, kind: input, shape index: {}]
  %s2 = inlined_call_operand.hbm [shape: f32[1,128], index: 2, kind: output, shape index: {}]
  %s3 = sld [smem:[#allocation0]]
  $region34: #{tpu_custom_call.1} parent=0
    _
  %s5 = ssub.s32 1, %s3
  %s6 = scalar_select 0, %s5, %s3
  $region1: #{tpu_custom_call.1} parent=0
    #allocation3 [shape = 'u8[102400]{0}', space=vmem, size = 0x19000, scoped, tag = 'input window, operand 0, single buffered']
    #allocation4 [shape = 's32[1]{0}', space=sflag, size = 0x4, scoped, tag = 'scoped memory for tpu_custom_call.1']
    #allocation5 [shape = 's32[1]{0}', space=sflag, size = 0x4, scoped, tag = 'scoped memory for tpu_custom_call.1']
    #allocation6 [shape = 'u8[2048]{0}', space=vmem, size = 0x800, scoped, tag = 'input window, operand 1, single buffered']
    #allocation7 [shape = 's32[1]{0}', space=sflag, size = 0x4, scoped, tag = 'scoped memory for tpu_custom_call.1']
    #allocation8 [shape = 'u8[512]{0}', space=vmem, size = 0x400, scoped, tag = 'output window, operand 0, single buffered']
    %7 = vsyncpa [#allocation4], 0
    %8 = vsyncpa [#allocation7], 0
    %9 = vsyncpa [#allocation5], 0
    // Predicated region
    $region2: #{tpu_custom_call.1} parent=1 // pred_check
      _
    $region3: #{tpu_custom_call.1} parent=1 // pred_check_branch
      %11 = sbr.rel (0) target = $region5
    $region4: #{tpu_custom_call.1} parent=1 // pred_region
      %s13 = ssub.s32 3200, 3200
      %14 = vsyncadd [#allocation4], %s13
      %s15 = sshll.u32 [#allocation3], 4
      %s16 = int_to_ptr.vmem [resolvable:$true] %s15
      %21 = dma.hbm_to_vmem [thread:$0]  %s0, 3200, %s16, [#allocation4], 128, 128, 8
    $region5: #{tpu_custom_call.1} parent=1 // pred_fallthru
      _
    // Predicated region
    $region6: #{tpu_custom_call.1} parent=1 // pred_check
      _
    $region7: #{tpu_custom_call.1} parent=1 // pred_check_branch
      %23 = sbr.rel (0) target = $region9
    $region8: #{tpu_custom_call.1} parent=1 // pred_region
      %s25 = ssub.s32 64, 64
      %26 = vsyncadd [#allocation7], %s25
      %s28 = sshll.u32 [#allocation6], 4
      %s29 = int_to_ptr.vmem [resolvable:$true] %s28
      %31 = dma.hbm_to_vmem [thread:$0]  %s1, 64, %s29, [#allocation7]
    $region9: #{tpu_custom_call.1} parent=1 // pred_fallthru
      _
    // Predicated region
    $region10: #{tpu_custom_call.1} parent=1 // pred_check
      _
    $region11: #{tpu_custom_call.1} parent=1 // pred_check_branch
      %33 = sbr.rel (0) target = $region13
    $region12: #{tpu_custom_call.1} parent=1 // pred_region
      %34 = dma.done [#allocation4], 3200
    $region13: #{tpu_custom_call.1} parent=1 // pred_fallthru
      _
    // Predicated region
    $region14: #{tpu_custom_call.1} parent=1 // pred_check
      _
    $region15: #{tpu_custom_call.1} parent=1 // pred_check_branch
      %36 = sbr.rel (0) target = $region17
    $region16: #{tpu_custom_call.1} parent=1 // pred_region
      %37 = dma.done [#allocation7], 64
    $region17: #{tpu_custom_call.1} parent=1 // pred_fallthru
      _
    %p38 = scmp.eq.s32.totalorder 0, 0
    // Predicated region
    $region18: #{tpu_custom_call.1} parent=1 // pred_check
      %p39 = pneg %p38
    $region19: #{tpu_custom_call.1} parent=1 // pred_check_branch
      %41 = sbr.rel (%p39) target = $region21
    $region20: #{tpu_custom_call.1} parent=1 // pred_region
      %42 = vst [vmem:[#allocation2] sm:$0x1] 0.0
    $region21: #{tpu_custom_call.1} parent=1 // pred_fallthru
      _
    %v43 = vld [vmem:[#allocation3] sm:$0xff]
    %v44 = vld [vmem:[#allocation3 + $0x8] sm:$0xff]
    %v45 = vld [vmem:[#allocation3 + $0x10] sm:$0xff]
    %v46 = vld [vmem:[#allocation3 + $0x18] sm:$0xff]
    %v47 = vld [vmem:[#allocation3 + $0x20] sm:$0xff]
    %v48 = vld [vmem:[#allocation3 + $0x28] sm:$0xff]
    %v49 = vld [vmem:[#allocation3 + $0x30] sm:$0xff]
    %v50 = vld [vmem:[#allocation3 + $0x38] sm:$0xff]
    %v51 = vld [vmem:[#allocation3 + $0x40] sm:$0xff]
    %v52 = vld [vmem:[#allocation3 + $0x48] sm:$0xff]
    %v53 = vld [vmem:[#allocation3 + $0x50] sm:$0xff]
    %v54 = vld [vmem:[#allocation3 + $0x58] sm:$0xff]
    %v55 = vld [vmem:[#allocation3 + $0x60] sm:$0xff]
    %v56 = vld [vmem:[#allocation3 + $0x68] sm:$0xff]
    %v57 = vld [vmem:[#allocation3 + $0x70] sm:$0xff]
    %v58 = vld [vmem:[#allocation3 + $0x78] sm:$0xff]
    %v59 = vld [vmem:[#allocation3 + $0x80] sm:$0xff]
    %v60 = vld [vmem:[#allocation3 + $0x88] sm:$0xff]
    %v61 = vld [vmem:[#allocation3 + $0x90] sm:$0xff]
    %v62 = vld [vmem:[#allocation3 + $0x98] sm:$0xff]
    %v63 = vld [vmem:[#allocation3 + $0xa0] sm:$0xff]
    %v64 = vld [vmem:[#allocation3 + $0xa8] sm:$0xff]
    %v65 = vld [vmem:[#allocation3 + $0xb0] sm:$0xff]
    %v66 = vld [vmem:[#allocation3 + $0xb8] sm:$0xff]
    %v67 = vld [vmem:[#allocation3 + $0xc0] sm:$0xff]
    %v68 = vld [vmem:[#allocation6] sm:$0x1]
    %v69 = vlaneseq
    %v70 = vshrl.u32 %v69, 7
    %v71 = vsub.s32 0, %v70
    %v72 = vrot.slane %v68, %v71
    %v73 = vmul.f32 %v43, %v72
    %v74 = vmul.f32 %v44, %v72
    %v75 = vmul.f32 %v45, %v72
    %v76 = vmul.f32 %v46, %v72
    %v77 = vmul.f32 %v47, %v72
    %v78 = vmul.f32 %v48, %v72
    %v79 = vmul.f32 %v49, %v72
    %v80 = vmul.f32 %v50, %v72
    %v81 = vmul.f32 %v51, %v72
    %v82 = vmul.f32 %v52, %v72
    %v83 = vmul.f32 %v53, %v72
    %v84 = vmul.f32 %v54, %v72
    %v85 = vmul.f32 %v55, %v72
    %v86 = vmul.f32 %v56, %v72
    %v87 = vmul.f32 %v57, %v72
    %v88 = vmul.f32 %v58, %v72
    %v89 = vmul.f32 %v59, %v72
    %v90 = vmul.f32 %v60, %v72
    %v91 = vmul.f32 %v61, %v72
    %v92 = vmul.f32 %v62, %v72
    %v93 = vmul.f32 %v63, %v72
    %v94 = vmul.f32 %v64, %v72
    %v95 = vmul.f32 %v65, %v72
    %v96 = vmul.f32 %v66, %v72
    %v97 = vmul.f32 %v67, %v72
    %98 = vadd.xlane.f32.xlu0 %v73
    %v99 = vpop.xlane.xlu0 %98
    %100 = vadd.xlane.f32.xlu0 %v74
    %v101 = vpop.xlane.xlu0 %100
    %102 = vadd.xlane.f32.xlu0 %v75
    %v103 = vpop.xlane.xlu0 %102
    %104 = vadd.xlane.f32.xlu0 %v76
    %v105 = vpop.xlane.xlu0 %104
    %106 = vadd.xlane.f32.xlu0 %v77
    %v107 = vpop.xlane.xlu0 %106
    %108 = vadd.xlane.f32.xlu0 %v78
    %v109 = vpop.xlane.xlu0 %108
    %110 = vadd.xlane.f32.xlu0 %v79
    %v111 = vpop.xlane.xlu0 %110
    %112 = vadd.xlane.f32.xlu0 %v80
    %v113 = vpop.xlane.xlu0 %112
    %114 = vadd.xlane.f32.xlu0 %v81
    %v115 = vpop.xlane.xlu0 %114
    %116 = vadd.xlane.f32.xlu0 %v82
    %v117 = vpop.xlane.xlu0 %116
    %118 = vadd.xlane.f32.xlu0 %v83
    %v119 = vpop.xlane.xlu0 %118
    %120 = vadd.xlane.f32.xlu0 %v84
    %v121 = vpop.xlane.xlu0 %120
    %122 = vadd.xlane.f32.xlu0 %v85
    %v123 = vpop.xlane.xlu0 %122
    %124 = vadd.xlane.f32.xlu0 %v86
    %v125 = vpop.xlane.xlu0 %124
    %126 = vadd.xlane.f32.xlu0 %v87
    %v127 = vpop.xlane.xlu0 %126
    %128 = vadd.xlane.f32.xlu0 %v88
    %v129 = vpop.xlane.xlu0 %128
    %130 = vadd.xlane.f32.xlu0 %v89
    %v131 = vpop.xlane.xlu0 %130
    %132 = vadd.xlane.f32.xlu0 %v90
    %v133 = vpop.xlane.xlu0 %132
    %134 = vadd.xlane.f32.xlu0 %v91
    %v135 = vpop.xlane.xlu0 %134
    %136 = vadd.xlane.f32.xlu0 %v92
    %v137 = vpop.xlane.xlu0 %136
    %138 = vadd.xlane.f32.xlu0 %v93
    %v139 = vpop.xlane.xlu0 %138
    %140 = vadd.xlane.f32.xlu0 %v94
    %v141 = vpop.xlane.xlu0 %140
    %142 = vadd.xlane.f32.xlu0 %v95
    %v143 = vpop.xlane.xlu0 %142
    %144 = vadd.xlane.f32.xlu0 %v96
    %v145 = vpop.xlane.xlu0 %144
    %146 = vadd.xlane.f32.xlu0 %v97
    %v147 = vpop.xlane.xlu0 %146
    %v148 = vld [vmem:[#allocation2] sm:$0x1]
    %v149 = vmul.f32 %v99, %v43
    %v150 = vmul.f32 %v101, %v44
    %v151 = vmul.f32 %v103, %v45
    %v152 = vmul.f32 %v105, %v46
    %v153 = vmul.f32 %v107, %v47
    %v154 = vmul.f32 %v109, %v48
    %v155 = vmul.f32 %v111, %v49
    %v156 = vmul.f32 %v113, %v50
    %v157 = vmul.f32 %v115, %v51
    %v158 = vmul.f32 %v117, %v52
    %v159 = vmul.f32 %v119, %v53
    %v160 = vmul.f32 %v121, %v54
    %v161 = vmul.f32 %v123, %v55
    %v162 = vmul.f32 %v125, %v56
    %v163 = vmul.f32 %v127, %v57
    %v164 = vmul.f32 %v129, %v58
    %v165 = vmul.f32 %v131, %v59
    %v166 = vmul.f32 %v133, %v60
    %v167 = vmul.f32 %v135, %v61
    %v168 = vmul.f32 %v137, %v62
    %v169 = vmul.f32 %v139, %v63
    %v170 = vmul.f32 %v141, %v64
    %v171 = vmul.f32 %v143, %v65
    %v172 = vmul.f32 %v145, %v66
    %v173 = vmul.f32 %v147, %v67
    %v174 = vadd.f32 %v149, %v150
    %v175 = vadd.f32 %v174, %v151
    %v176 = vadd.f32 %v175, %v152
    %v177 = vadd.f32 %v176, %v153
    %v178 = vadd.f32 %v177, %v154
    %v179 = vadd.f32 %v178, %v155
    %v180 = vadd.f32 %v179, %v156
    %v181 = vadd.f32 %v180, %v157
    %v182 = vadd.f32 %v181, %v158
    %v183 = vadd.f32 %v182, %v159
    %v184 = vadd.f32 %v183, %v160
    %v185 = vadd.f32 %v184, %v161
    %v186 = vadd.f32 %v185, %v162
    %v187 = vadd.f32 %v186, %v163
    %v188 = vadd.f32 %v187, %v164
    %v189 = vadd.f32 %v188, %v165
    %v190 = vadd.f32 %v189, %v166
    %v191 = vadd.f32 %v190, %v167
    %v192 = vadd.f32 %v191, %v168
    %v193 = vadd.f32 %v192, %v169
    %v194 = vadd.f32 %v193, %v170
    %v195 = vadd.f32 %v194, %v171
    %v196 = vadd.f32 %v195, %v172
    %v197 = vadd.f32 %v196, %v173
    %v198 = vrot.slane %v197, 4
    %v199 = vadd.f32 %v197, %v198
    %v200 = vrot.slane %v199, 2
    %v201 = vadd.f32 %v199, %v200
    %v202 = vrot.slane %v201, 1
    %v203 = vadd.f32 %v201, %v202
    %v204 = vadd.f32 %v148, %v203
    %205 = vst [vmem:[#allocation2] sm:$0x1] %v204
    // Predicated region
    $region22: #{tpu_custom_call.1} parent=1 // pred_check
      %p206 = pneg %p38
    $region23: #{tpu_custom_call.1} parent=1 // pred_check_branch
      %208 = sbr.rel (%p206) target = $region25
    $region24: #{tpu_custom_call.1} parent=1 // pred_region
      %v209 = vld [vmem:[#allocation2] sm:$0x1]
      %v210 = vld [vmem:[#allocation6 + $0x1] sm:$0x1]
      %v211 = vld [vmem:[#allocation6 + $0x2] sm:$0x1]
      %v212 = vld [vmem:[#allocation6 + $0x3] sm:$0x1]
      %v214 = vrot.slane %v210, 7
      %v217 = vrot.slane %v211, 6
      %vm219 = vcmask 1040384
      %v220 = vsel %vm219, %v209, %v214
      %vm221 = vcmask 1041408
      %v222 = vsel %vm221, %v220, %v217
      %v223 = vlaneseq
      %v224 = vshrl.u32 %v223, 7
      %v225 = vsub.s32 0, %v224
      %v226 = vrot.slane %v212, %v225
      %v227 = vmul.f32 %v222, %v226
      %vm228 = vcmask 1042432
      %v229 = vsel %vm228, %v227, 0.0
      %230 = vadd.xlane.f32.xlu0 %v229
      %v231 = vpop.xlane.xlu0 %230
      %v232 = vmul.f32 %v222, %v222
      %v233 = vsel %vm228, %v232, 0.0
      %234 = vadd.xlane.f32.xlu0 %v233
      %v235 = vpop.xlane.xlu0 %234
      %v236 = vrsqrt.pop %v235
      %v237 = vmul.f32 %v235, %v236
      %vm238 = vcmp.eq.f32.partialorder %v235, inf
      %v239 = vsel %vm238, %v235, %v237
      %vm240 = vcmp.eq.f32.partialorder %v235, 0.0
      %v241 = vand.u32 %v235, 2147483648
      %v242 = vsel %vm240, %v241, %v239
      %v243 = vmul.f32 %v212, %v212
      %v244 = vsel %vm219, %v243, 0.0
      %245 = vadd.xlane.f32.xlu0 %v244
      %v246 = vpop.xlane.xlu0 %245
      %v247 = vrsqrt.pop %v246
      %v248 = vmul.f32 %v246, %v247
      %vm249 = vcmp.eq.f32.partialorder %v246, inf
      %v250 = vsel %vm249, %v246, %v248
      %vm251 = vcmp.eq.f32.partialorder %v246, 0.0
      %v252 = vand.u32 %v246, 2147483648
      %v253 = vsel %vm251, %v252, %v250
      %v254 = vmax.f32 %v242, 1e-08
      %v255 = vmax.f32 %v253, 1e-08
      %v256 = vlaneseq
      %v257 = vshrl.u32 %v256, 7
      %v258 = vsub.s32 0, %v257
      %v259 = vrot.slane %v255, %v258
      %v260 = vmul.f32 %v254, %v259
      %v261 = vrcp.pop %v260
      %v262 = vmul.f32 %v231, %v261
      %v263 = vsel %vm228, %v262, -inf
      %v264 = vrot.slane %v263, 4
      %v265 = vmax.f32 %v263, %v264
      %v266 = vrot.slane %v265, 2
      %v267 = vmax.f32 %v265, %v266
      %v268 = vrot.slane %v267, 1
      %v269 = vmax.f32 %v267, %v268
      %v270 = vsub.f32 %v262, %v269
      %v271 = vmul.f32 %v270, 1.442695
      %v272 = vpow.pop %v271
      %v273 = vsel %vm228, %v272, 0.0
      %v274 = vrot.slane %v273, 4
      %v275 = vadd.f32 %v273, %v274
      %v276 = vrot.slane %v275, 2
      %v277 = vadd.f32 %v275, %v276
      %v278 = vrot.slane %v277, 1
      %v279 = vadd.f32 %v277, %v278
      %v280 = vrcp.pop %v279
      %v281 = vmul.f32 %v272, %v280
      %v282 = vmul.f32 %v281, %v222
      %v283 = vsel %vm228, %v282, 0.0
      %v284 = vrot.slane %v283, 4
      %v285 = vadd.f32 %v283, %v284
      %v286 = vrot.slane %v285, 2
      %v287 = vadd.f32 %v285, %v286
      %v288 = vrot.slane %v287, 1
      %v289 = vadd.f32 %v287, %v288
      %290 = vst [vmem:[#allocation8] sm:$0x1] %v289
    $region25: #{tpu_custom_call.1} parent=1 // pred_fallthru
      _
    // Predicated region
    $region26: #{tpu_custom_call.1} parent=1 // pred_check
      _
    $region27: #{tpu_custom_call.1} parent=1 // pred_check_branch
      %292 = sbr.rel (0) target = $region29
    $region28: #{tpu_custom_call.1} parent=1 // pred_region
      %s294 = ssub.s32 16, 16
      %295 = vsyncadd [#allocation5], %s294
      %s297 = sshll.u32 [#allocation8], 4
      %s298 = int_to_ptr.vmem [resolvable:$true] %s297
      %300 = dma.vmem_to_hbm [thread:$0]  %s298, 16, %s2, [#allocation5]
    $region29: #{tpu_custom_call.1} parent=1 // pred_fallthru
      _
    // Predicated region
    $region30: #{tpu_custom_call.1} parent=1 // pred_check
      _
    $region31: #{tpu_custom_call.1} parent=1 // pred_check_branch
      %302 = sbr.rel (0) target = $region33
    $region32: #{tpu_custom_call.1} parent=1 // pred_region
      %303 = dma.done [#allocation5], 16
    $region33: #{tpu_custom_call.1} parent=1 // pred_fallthru
      _
    %304 = vsyncpa [#allocation4], 1
    %305 = vsyncpa [#allocation7], 1
    %306 = vsyncpa [#allocation5], 1

</llo_original>
